<compile_context>
chip_gen: v6e
topology: v6e:2x2x1
jax: 0.10.0
libtpu: 0.0.40
codegen_flags: <defaults>
</compile_context>

<pallas_src>
import functools

import jax
import jax.numpy as jnp
from jax.experimental import pallas as pl
from jax.experimental.pallas import tpu as pltpu


def _round_up(v, m):
    return ((v + m - 1) // m) * m


def _graph_matmul_kernel(adj_ref, x_ref, o_ref):
    """One (tm, F) output block; grid axis 1 sweeps the contraction (K).

    The output block index is constant over k, so o_ref stays resident in
    VMEM and is used directly as the f32 accumulator (no scratch needed).
    """
    @pl.when(pl.program_id(1) == 0)
    def _():
        o_ref[...] = jnp.zeros_like(o_ref)

    o_ref[...] += jnp.dot(
        adj_ref[...], x_ref[...], preferred_element_type=jnp.float32
    )


def _choose_tiles(M, K, tm_req, tk_req):
    # tk is the lane dim of the adj block -> multiple of 128 (or full K).
    tk = min(tk_req, _round_up(K, 128))
    # tm is a sublane dim -> keep it a multiple of 16 (bf16 packing safe).
    tm = min(tm_req, _round_up(M, 16))
    # Keep >= 2 blocks along the parallel (m) axis when possible so both
    # TensorCores get work on 2-TC chips (v7x); no effect on 1-TC chips.
    if _round_up(M, tm) // tm < 2 and tm > 16 and M > tm // 2:
        tm = max(16, _round_up(tm // 2, 16))
    return tm, tk


@functools.partial(jax.jit, static_argnames=("tm", "tk", "compute_dtype"))
def graph_forward(adj, x, *, tm=256, tk=1024, compute_dtype=jnp.bfloat16):
    """Pallas equivalent of Graph.forward: adj.matmul(x)."""
    M, K = adj.shape
    K2, F = x.shape
    assert K == K2, "adjacency / feature inner dims must match"
    out_dtype = x.dtype

    tm, tk = _choose_tiles(M, K, tm, tk)
    M_pad = _round_up(M, tm)
    K_pad = _round_up(K, tk)
    F_pad = _round_up(F, 128)  # lane-dense output (unmasked vst)

    # Adjacency entries are 0/1 -> exact in bf16; features cast to bf16 too
    # (f32 accumulation in-kernel).  Zero-padding contributes nothing.
    adj_c = adj.astype(compute_dtype)
    x_c = x.astype(compute_dtype)
    if (M_pad, K_pad) != (M, K):
        adj_c = jnp.pad(adj_c, ((0, M_pad - M), (0, K_pad - K)))
    if (K_pad, F_pad) != (K, F):
        x_c = jnp.pad(x_c, ((0, K_pad - K), (0, F_pad - F)))

    grid_m = M_pad // tm
    grid_k = K_pad // tk
    itemsize = jnp.dtype(compute_dtype).itemsize

    cost = pl.CostEstimate(
        flops=2 * M_pad * K_pad * F_pad,
        transcendentals=0,
        bytes_accessed=(
            M_pad * K_pad * itemsize            # adj streamed exactly once
            + K_pad * F_pad * itemsize * grid_m  # x re-read per m-block
            + M_pad * F_pad * 4                  # f32 output
        ),
    )

    y_full = pl.pallas_call(
        _graph_matmul_kernel,
        out_shape=jax.ShapeDtypeStruct((M_pad, F_pad), jnp.float32),
        grid_spec=pltpu.PrefetchScalarGridSpec(
            num_scalar_prefetch=0,
            grid=(grid_m, grid_k),
            in_specs=[
                pl.BlockSpec((tm, tk), lambda i, k: (i, k)),       # adj tile
                pl.BlockSpec((tk, F_pad), lambda i, k: (k, 0)),    # x tile
            ],
            out_specs=pl.BlockSpec((tm, F_pad), lambda i, k: (i, 0)),
        ),
        compiler_params=pltpu.CompilerParams(
            dimension_semantics=("parallel", "arbitrary"),
        ),
        cost_estimate=cost,
    )(adj_c, x_c)

    return y_full[:M, :F].astype(out_dtype)


if __name__ == "__main__":
    # Small, deterministic example: 256 nodes, 128 features.
    key = jax.random.PRNGKey(0)
    k_adj, k_x = jax.random.split(key)

    n_nodes, feat = 256, 128
    adj = (jax.random.uniform(k_adj, (n_nodes, n_nodes), dtype=jnp.float32) < 0.1)
    adj = adj.astype(jnp.float32)
    x = jax.random.normal(k_x, (n_nodes, feat), dtype=jnp.float32)

    y = graph_forward(adj, x)
    y = jax.block_until_ready(y)

    # Reference with the same bf16 feature cast the kernel uses (adj 0/1 is
    # exact in bf16), accumulated in f32 -> results should agree tightly.
    y_ref = jnp.dot(
        adj, x.astype(jnp.bfloat16).astype(jnp.float32),
        preferred_element_type=jnp.float32,
    )

    assert y.shape == (n_nodes, feat)
    assert jnp.allclose(y, y_ref, atol=1e-2, rtol=1e-2), "mismatch vs reference"

    print("KERNEL_OK")
</pallas_src>

<mosaic_0001>
module attributes {stable_mosaic.version = 11 : i64} {
  func.func @_graph_matmul_kernel(%arg0: i32, %arg1: i32, %arg2: memref<128x256xbf16, #tpu.memory_space<vmem>>, %arg3: memref<256x128xbf16, #tpu.memory_space<vmem>>, %arg4: memref<128x128xf32, #tpu.memory_space<vmem>>) attributes {dimension_semantics = [#tpu.dimension_semantics<parallel>, #tpu.dimension_semantics<arbitrary>], iteration_bounds = array<i64: 2, 1>, scalar_prefetch = 0 : i64, scratch_operands = 0 : i64, tpu.core_type = #tpu.core_type<tc>, window_params = [{transform_indices = @transform_0, window_bounds = array<i64: 128, 256>}, {transform_indices = @transform_1, window_bounds = array<i64: 256, 128>}, {transform_indices = @transform_2, window_bounds = array<i64: 128, 128>}]} {
    %c0_i32 = arith.constant 0 : i32
    %0 = arith.cmpi eq, %arg1, %c0_i32 : i32
    %1 = arith.extui %0 : i1 to i32
    %c0_i32_0 = arith.constant 0 : i32
    %2 = arith.cmpi ne, %1, %c0_i32_0 : i32
    scf.if %2 {
      %cst_8 = arith.constant 0.000000e+00 : f32
      %9 = vector.broadcast %cst_8 : f32 to vector<128x128xf32>
      %c0_9 = arith.constant 0 : index
      %c0_10 = arith.constant 0 : index
      %10 = vector.load %arg4[%c0_9, %c0_10] : memref<128x128xf32, #tpu.memory_space<vmem>>, vector<128x128xf32>
      tpu.vector_store %arg4[%c0_9, %c0_10], %9 {strides = array<i32>} : memref<128x128xf32, #tpu.memory_space<vmem>>, vector<128x128xf32>,
    } else {
    }
    %c0 = arith.constant 0 : index
    %c0_1 = arith.constant 0 : index
    %3 = vector.load %arg4[%c0, %c0_1] : memref<128x128xf32, #tpu.memory_space<vmem>>, vector<128x128xf32>
    %c0_2 = arith.constant 0 : index
    %c0_3 = arith.constant 0 : index
    %4 = vector.load %arg2[%c0_2, %c0_3] : memref<128x256xbf16, #tpu.memory_space<vmem>>, vector<128x256xbf16>
    %c0_4 = arith.constant 0 : index
    %c0_5 = arith.constant 0 : index
    %5 = vector.load %arg3[%c0_4, %c0_5] : memref<256x128xbf16, #tpu.memory_space<vmem>>, vector<256x128xbf16>
    %cst = arith.constant dense<0.000000e+00> : vector<128x128xf32>
    %6 = tpu.matmul %4, %5, %cst {dimension_numbers = #tpu.dot_dimension_numbers<[1], [0], [0], [1], [0, 0, 1, 1], [], []>} : vector<128x256xbf16>, vector<256x128xbf16>, vector<128x128xf32> -> vector<128x128xf32>
    %7 = arith.addf %3, %6 : vector<128x128xf32>
    %c0_6 = arith.constant 0 : index
    %c0_7 = arith.constant 0 : index
    %8 = vector.load %arg4[%c0_6, %c0_7] : memref<128x128xf32, #tpu.memory_space<vmem>>, vector<128x128xf32>
    tpu.vector_store %arg4[%c0_6, %c0_7], %7 {strides = array<i32>} : memref<128x128xf32, #tpu.memory_space<vmem>>, vector<128x128xf32>,
    return
  }
  func.func @transform_0(%arg0: i32, %arg1: i32) -> (i32, i32) {
    %c0_i32 = arith.constant 0 : i32
    return %arg0, %arg1 : i32, i32
  }
  func.func @transform_1(%arg0: i32, %arg1: i32) -> (i32, i32) {
    %c0_i32 = arith.constant 0 : i32
    %c0_i32_0 = arith.constant 0 : i32
    return %arg1, %c0_i32 : i32, i32
  }
  func.func @transform_2(%arg0: i32, %arg1: i32) -> (i32, i32) {
    %c0_i32 = arith.constant 0 : i32
    %c0_i32_0 = arith.constant 0 : i32
    return %arg0, %c0_i32 : i32, i32
  }
}

</mosaic_0001>

<llo_original>
// kernel: graph_forward.1
$region0: #{graph_forward.1}
  #allocation0 [shape = 'u32[]', space=smem, size = 0x4, offset = 0x4, fixed_abs, tag = 'smem constant byte address 0x4 - core index']
  #allocation1 [shape = 'u32[144,128]{1,0:T(1,128)}', space=vmem, size = 0x12000, scoped, tag = 'internal scratch']
  %s0 = inlined_call_operand.vmem [shape: bf16[256,256], index: 0, kind: input, shape index: {}]
  %s1 = inlined_call_operand.vmem [shape: bf16[256,128], index: 1, kind: input, shape index: {}]
  %s2 = inlined_call_operand.hbm [shape: f32[256,128], index: 2, kind: output, shape index: {}]
  %s3 = sld [smem:[#allocation0]]
  $region45: #{graph_forward.1} parent=0
    _
  %s5 = ssub.s32 1, %s3
  %s6 = scalar_select 0, %s5, %s3
  $region1: #{graph_forward.1} parent=0
    #allocation2 [shape = 'u8[131072]{0}', space=vmem, size = 0x20000, scoped, tag = 'output window, operand 0']
    #allocation3 [shape = 's32[2]{0}', space=sflag, size = 0x8, scoped, tag = 'scoped memory for graph_forward.1']
    %7 = vsyncpa [#allocation3], 0
    %s8 = scalar_lea.sflag [#allocation3], 1
    %9 = vsyncpa %s8, 0
    loop: start=0, step=1, limit=4
    $region2: #{graph_forward.1} parent=1 // loop_pre_header
      _
    $region3: #{graph_forward.1} parent=1 // loop_header
      %s11 = sphi 0, %s15
      %p12 = scmp.ge.s32.totalorder %s11, 4
      %s18 = sphi 0, %s30
      %s19 = sphi 0, %s26
      %s20 = sphi 0, %s18
      %s21 = sphi 0, %s19
      %s22 = sphi 0, %s20
      %s23 = sphi 0, %s21
      %s35 = sphi 0, %s37
      %s38 = sphi 0, %s35
      %s39 = sphi 0, %s38
      %s55 = sphi 0, %s39
      %s61 = sphi 0, %s63
      %s64 = sphi 0, %s61
      %s65 = sphi 0, %s64
      %s81 = sphi 0, %s65
      %s87 = sphi 0, %s89
      %s90 = sphi 0, %s87
      %s91 = sphi 0, %s90
      %s107 = sphi 0, %s91
    $region4: #{graph_forward.1} parent=1 // loop_header_branch
      %14 = sbr.rel (%p12) target = $region8
    $region5: #{graph_forward.1} parent=1 // loop_body
      %s16 = ssub.s32 %s11, 1
      %s17 = ssub.s32 %s11, 2
      %s24 = sadd.s32 1, %s19
      %p25 = scmp.ge.s32.totalorder %s24, 1
      %s26 = scalar_select %p25, 0, %s24
      %s27 = sadd.s32 1, %s18
      %s28 = scalar_select %p25, %s27, %s18
      %p29 = scmp.ge.s32.totalorder %s28, 2
      %s30 = scalar_select %p29, 0, %s28
      %s31 = ssub.s32 %s18, %s30
      %s32 = ssub.s32 %s19, %s26
      %s33 = sor.u32 %s31, %s32
      %p34 = scmp.eq.s32.totalorder %s33, 0
      %s36 = sadd.s32 %s35, 1
      %s37 = scalar_select %p34, %s35, %s36
      %p40 = pneg %p34
      %p41 = scmp.eq.s32.totalorder %s11, 1
      %p42 = por %p40, %p41
      %p43 = scmp.ne.s32.totalorder %s35, %s38
      %p44 = scmp.eq.s32.totalorder %s11, 0
      %p45 = por %p43, %p44
      %p46 = scmp.ne.s32.totalorder %s35, %s38
      %p47 = scmp.eq.s32.totalorder %s16, 1
      %p48 = por %p46, %p47
      %p49 = scmp.ne.s32.totalorder %s38, %s39
      %p50 = scmp.eq.s32.totalorder %s16, 0
      %p51 = por %p49, %p50
      %p52 = scmp.ne.s32.totalorder %s38, %s39
      %p53 = scmp.eq.s32.totalorder %s17, 1
      %p54 = por %p52, %p53
      %p56 = scmp.ne.s32.totalorder %s39, %s55
      %p57 = scmp.eq.s32.totalorder %s17, 0
      %p58 = por %p56, %p57
      %s59 = ssub.s32 %s19, %s26
      %p60 = scmp.eq.s32.totalorder %s59, 0
      %s62 = sadd.s32 %s61, 1
      %s63 = scalar_select %p60, %s61, %s62
      %p66 = pneg %p60
      %p67 = scmp.eq.s32.totalorder %s11, 1
      %p68 = por %p66, %p67
      %p69 = scmp.ne.s32.totalorder %s61, %s64
      %p70 = scmp.eq.s32.totalorder %s11, 0
      %p71 = por %p69, %p70
      %p72 = scmp.ne.s32.totalorder %s61, %s64
      %p73 = scmp.eq.s32.totalorder %s16, 1
      %p74 = por %p72, %p73
      %p75 = scmp.ne.s32.totalorder %s64, %s65
      %p76 = scmp.eq.s32.totalorder %s16, 0
      %p77 = por %p75, %p76
      %p78 = scmp.ne.s32.totalorder %s64, %s65
      %p79 = scmp.eq.s32.totalorder %s17, 1
      %p80 = por %p78, %p79
      %p82 = scmp.ne.s32.totalorder %s65, %s81
      %p83 = scmp.eq.s32.totalorder %s17, 0
      %p84 = por %p82, %p83
      %s85 = ssub.s32 %s18, %s30
      %p86 = scmp.eq.s32.totalorder %s85, 0
      %s88 = sadd.s32 %s87, 1
      %s89 = scalar_select %p86, %s87, %s88
      %p92 = pneg %p86
      %p93 = scmp.eq.s32.totalorder %s11, 1
      %p94 = por %p92, %p93
      %p95 = scmp.ne.s32.totalorder %s87, %s90
      %p96 = scmp.eq.s32.totalorder %s11, 0
      %p97 = por %p95, %p96
      %p98 = scmp.ne.s32.totalorder %s87, %s90
      %p99 = scmp.eq.s32.totalorder %s16, 1
      %p100 = por %p98, %p99
      %p101 = scmp.ne.s32.totalorder %s90, %s91
      %p102 = scmp.eq.s32.totalorder %s16, 0
      %p103 = por %p101, %p102
      %p104 = scmp.ne.s32.totalorder %s90, %s91
      %p105 = scmp.eq.s32.totalorder %s17, 1
      %p106 = por %p104, %p105
      %p108 = scmp.ne.s32.totalorder %s91, %s107
      %p109 = scmp.eq.s32.totalorder %s17, 0
      %p110 = por %p108, %p109
      %p111 = scmp.le.s32.totalorder 1, %s11
      %p112 = scmp.lt.s32.totalorder %s11, 3
      %p113 = pnand %p111, %p112
      %p114 = pneg %p113
      // Predicated region
      $region9: #{graph_forward.1} parent=5 // pred_check
        _
      $region10: #{graph_forward.1} parent=5 // pred_check_branch
        %116 = sbr.rel (%p113) target = $region12
      $region11: #{graph_forward.1} parent=5 // pred_region
        %s117 = ssub.s32 %s11, 1
        // Predicated region
        $region13: #{graph_forward.1} parent=11 // pred_check
          %p118 = pneg %p77
        $region14: #{graph_forward.1} parent=11 // pred_check_branch
          %120 = sbr.rel (%p118) target = $region16
        $region15: #{graph_forward.1} parent=11 // pred_region
          %s121 = smul.u32 32, %s21
          %p122 = scmp.lt.s32.totalorder %s121, 31
          %s123 = scalar_select %p122, %s121, 31
          %s124 = smul.addr %s123, 4
          %s125 = scalar_lea.vmem %s1, %s124
          %s126 = smul.u32 32, %s21
        $region16: #{graph_forward.1} parent=11 // pred_fallthru
          _
      $region12: #{graph_forward.1} parent=5 // pred_fallthru
        _
      %p127 = scmp.lt.s32.totalorder %s11, 2
      // Predicated region
      $region17: #{graph_forward.1} parent=5 // pred_check
        %p128 = pneg %p127
      $region18: #{graph_forward.1} parent=5 // pred_check_branch
        %130 = sbr.rel (%p128) target = $region20
      $region19: #{graph_forward.1} parent=5 // pred_region
        // Predicated region
        $region21: #{graph_forward.1} parent=19 // pred_check
          %p131 = pneg %p45
        $region22: #{graph_forward.1} parent=19 // pred_check_branch
          %133 = sbr.rel (%p131) target = $region24
        $region23: #{graph_forward.1} parent=19 // pred_region
          %s134 = smul.u32 16, %s18
          %s135 = smul.u32 2, %s19
          %p136 = scmp.lt.s32.totalorder %s134, 31
          %s137 = scalar_select %p136, %s134, 31
          %p138 = scmp.lt.s32.totalorder %s135, 1
          %s139 = scalar_select %p138, %s135, 1
          %s140 = smul.addr %s137, 2
          %s141 = sadd.s32 %s139, %s140
          %s142 = smul.addr %s141, 4
          %s143 = scalar_lea.vmem %s0, %s142
          %s144 = smul.u32 16, %s18
          %s145 = smul.u32 2, %s19
        $region24: #{graph_forward.1} parent=19 // pred_fallthru
          _
      $region20: #{graph_forward.1} parent=5 // pred_fallthru
        _
      %p146 = scmp.le.s32.totalorder 1, %s11
      %p147 = scmp.lt.s32.totalorder %s11, 3
      %p148 = pnand %p146, %p147
      %p149 = pneg %p148
      // Predicated region
      $region25: #{graph_forward.1} parent=5 // pred_check
        _
      $region26: #{graph_forward.1} parent=5 // pred_check_branch
        %151 = sbr.rel (%p148) target = $region28
      $region27: #{graph_forward.1} parent=5 // pred_region
        %s152 = ssub.s32 %s11, 1
        %s153 = smul.u32 16, %s20
        %s154 = smul.u32 2, %s21
        %p155 = scmp.lt.s32.totalorder %s153, 31
        %s156 = scalar_select %p155, %s153, 31
        %p157 = scmp.lt.s32.totalorder %s154, 1
        %s158 = scalar_select %p157, %s154, 1
        %s159 = smul.addr %s156, 2
        %s160 = sadd.s32 %s158, %s159
        %s161 = smul.addr %s160, 4
        %s162 = scalar_lea.vmem %s0, %s161
        %p163 = pneg %p51
        %p164 = pneg %p48
        %s165 = smul.u32 32, %s21
        %p166 = scmp.lt.s32.totalorder %s165, 31
        %s167 = scalar_select %p166, %s165, 31
        %s168 = smul.addr %s167, 4
        %s169 = scalar_lea.vmem %s1, %s168
        %p170 = pneg %p77
        %p171 = pneg %p74
        %p172 = pneg %p103
        %p173 = pneg %p100
        %s174 = sand.u32 %s90, 1
        %s175 = scalar_lea.sflag [#allocation3], %s174
        %s176 = sand.u32 %s90, 1
        %s177 = smul.addr %s176, 128
        %s178 = scalar_lea.vmem [#allocation2], %s177
        %s179 = smul.u32 16, %s20
        %s180 = smul.u32 2, %s21
        %p181 = scmp.lt.s32.totalorder %s179, 31
        %s182 = scalar_select %p181, %s179, 31
        %p183 = scmp.lt.s32.totalorder %s180, 1
        %s184 = scalar_select %p183, %s180, 1
        %s185 = smul.addr %s182, 2
        %s186 = sadd.s32 %s184, %s185
        %s187 = smul.addr %s186, 4
        %s188 = scalar_lea.vmem %s0, %s187
        %s189 = smul.u32 16, %s20
        %s190 = smul.u32 2, %s21
        %s191 = smul.u32 32, %s21
        %p192 = scmp.lt.s32.totalorder %s191, 31
        %s193 = scalar_select %p192, %s191, 31
        %s194 = smul.addr %s193, 4
        %s195 = scalar_lea.vmem %s1, %s194
        %s196 = smul.u32 32, %s21
        %s197 = smul.u32 16, %s20
        %p199 = scmp.eq.s32.totalorder %s21, 0
        // Predicated region
        $region29: #{graph_forward.1} parent=27 // pred_check
          %p200 = pneg %p199
        $region30: #{graph_forward.1} parent=27 // pred_check_branch
          %202 = sbr.rel (%p200) target = $region32
        $region31: #{graph_forward.1} parent=27 // pred_region
          %203 = vst [vmem:[%s178] sm:$0xff] 0.0
          %204 = vst [vmem:[%s178 + $0x8] sm:$0xff] 0.0
          %205 = vst [vmem:[%s178 + $0x10] sm:$0xff] 0.0
          %206 = vst [vmem:[%s178 + $0x18] sm:$0xff] 0.0
          %207 = vst [vmem:[%s178 + $0x20] sm:$0xff] 0.0
          %208 = vst [vmem:[%s178 + $0x28] sm:$0xff] 0.0
          %209 = vst [vmem:[%s178 + $0x30] sm:$0xff] 0.0
          %210 = vst [vmem:[%s178 + $0x38] sm:$0xff] 0.0
          %211 = vst [vmem:[%s178 + $0x40] sm:$0xff] 0.0
          %212 = vst [vmem:[%s178 + $0x48] sm:$0xff] 0.0
          %213 = vst [vmem:[%s178 + $0x50] sm:$0xff] 0.0
          %214 = vst [vmem:[%s178 + $0x58] sm:$0xff] 0.0
          %215 = vst [vmem:[%s178 + $0x60] sm:$0xff] 0.0
          %216 = vst [vmem:[%s178 + $0x68] sm:$0xff] 0.0
          %217 = vst [vmem:[%s178 + $0x70] sm:$0xff] 0.0
          %218 = vst [vmem:[%s178 + $0x78] sm:$0xff] 0.0
        $region32: #{graph_forward.1} parent=27 // pred_fallthru
          _
        %v219 = vld [vmem:[%s178] sm:$0xff]
        %v220 = vld [vmem:[%s178 + $0x8] sm:$0xff]
        %v221 = vld [vmem:[%s178 + $0x10] sm:$0xff]
        %v222 = vld [vmem:[%s178 + $0x18] sm:$0xff]
        %v223 = vld [vmem:[%s178 + $0x20] sm:$0xff]
        %v224 = vld [vmem:[%s178 + $0x28] sm:$0xff]
        %v225 = vld [vmem:[%s178 + $0x30] sm:$0xff]
        %v226 = vld [vmem:[%s178 + $0x38] sm:$0xff]
        %v227 = vld [vmem:[%s178 + $0x40] sm:$0xff]
        %v228 = vld [vmem:[%s178 + $0x48] sm:$0xff]
        %v229 = vld [vmem:[%s178 + $0x50] sm:$0xff]
        %v230 = vld [vmem:[%s178 + $0x58] sm:$0xff]
        %v231 = vld [vmem:[%s178 + $0x60] sm:$0xff]
        %v232 = vld [vmem:[%s178 + $0x68] sm:$0xff]
        %v233 = vld [vmem:[%s178 + $0x70] sm:$0xff]
        %v234 = vld [vmem:[%s178 + $0x78] sm:$0xff]
        %v235 = vld [vmem:[%s188] sm:$0xff]
        %v236 = vld [vmem:[%s188 + $0x8] sm:$0xff]
        %v237 = vld [vmem:[%s188 + $0x10] sm:$0xff]
        %v238 = vld [vmem:[%s188 + $0x18] sm:$0xff]
        %v239 = vld [vmem:[%s188 + $0x20] sm:$0xff]
        %v240 = vld [vmem:[%s188 + $0x28] sm:$0xff]
        %v241 = vld [vmem:[%s188 + $0x30] sm:$0xff]
        %v242 = vld [vmem:[%s188 + $0x38] sm:$0xff]
        %v243 = vld [vmem:[%s188 + $0x40] sm:$0xff]
        %v244 = vld [vmem:[%s188 + $0x48] sm:$0xff]
        %v245 = vld [vmem:[%s188 + $0x50] sm:$0xff]
        %v246 = vld [vmem:[%s188 + $0x58] sm:$0xff]
        %v247 = vld [vmem:[%s188 + $0x60] sm:$0xff]
        %v248 = vld [vmem:[%s188 + $0x68] sm:$0xff]
        %v249 = vld [vmem:[%s188 + $0x70] sm:$0xff]
        %v250 = vld [vmem:[%s188 + $0x78] sm:$0xff]
        %v251 = vld [vmem:[%s195] sm:$0xf]
        %v252 = vld [vmem:[%s195 + $0x4] sm:$0xf]
        %v253 = vld [vmem:[%s195 + $0x8] sm:$0xf]
        %v254 = vld [vmem:[%s195 + $0xc] sm:$0xf]
        %v255 = vld [vmem:[%s195 + $0x10] sm:$0xf]
        %v256 = vld [vmem:[%s195 + $0x14] sm:$0xf]
        %v257 = vld [vmem:[%s195 + $0x18] sm:$0xf]
        %v258 = vld [vmem:[%s195 + $0x1c] sm:$0xf]
        %v259 = vld [vmem:[%s195 + $0x20] sm:$0xf]
        %v260 = vld [vmem:[%s195 + $0x24] sm:$0xf]
        %v261 = vld [vmem:[%s195 + $0x28] sm:$0xf]
        %v262 = vld [vmem:[%s195 + $0x2c] sm:$0xf]
        %v263 = vld [vmem:[%s195 + $0x30] sm:$0xf]
        %v264 = vld [vmem:[%s195 + $0x34] sm:$0xf]
        %v265 = vld [vmem:[%s195 + $0x38] sm:$0xf]
        %v266 = vld [vmem:[%s195 + $0x3c] sm:$0xf]
        %v267 = vld [vmem:[%s195 + $0x40] sm:$0xf]
        %v268 = vld [vmem:[%s195 + $0x44] sm:$0xf]
        %v269 = vld [vmem:[%s195 + $0x48] sm:$0xf]
        %v270 = vld [vmem:[%s195 + $0x4c] sm:$0xf]
        %v271 = vld [vmem:[%s195 + $0x50] sm:$0xf]
        %v272 = vld [vmem:[%s195 + $0x54] sm:$0xf]
        %v273 = vld [vmem:[%s195 + $0x58] sm:$0xf]
        %v274 = vld [vmem:[%s195 + $0x5c] sm:$0xf]
        %v275 = vld [vmem:[%s195 + $0x60] sm:$0xf]
        %v276 = vld [vmem:[%s195 + $0x64] sm:$0xf]
        %v277 = vld [vmem:[%s195 + $0x68] sm:$0xf]
        %v278 = vld [vmem:[%s195 + $0x6c] sm:$0xf]
        %v279 = vld [vmem:[%s195 + $0x70] sm:$0xf]
        %v280 = vld [vmem:[%s195 + $0x74] sm:$0xf]
        %v281 = vld [vmem:[%s195 + $0x78] sm:$0xf]
        %v282 = vld [vmem:[%s195 + $0x7c] sm:$0xf]
        %v299 = vunpack.c.l.b16 %v235
        %v300 = vunpack.c.h.b16 %v235
        %v301 = vunpack.c.l.b16 %v236
        %v302 = vunpack.c.h.b16 %v236
        %v303 = vunpack.c.l.b16 %v237
        %v304 = vunpack.c.h.b16 %v237
        %v305 = vunpack.c.l.b16 %v238
        %v306 = vunpack.c.h.b16 %v238
        %v307 = vunpack.c.l.b16 %v239
        %v308 = vunpack.c.h.b16 %v239
        %v309 = vunpack.c.l.b16 %v240
        %v310 = vunpack.c.h.b16 %v240
        %v311 = vunpack.c.l.b16 %v241
        %v312 = vunpack.c.h.b16 %v241
        %v313 = vunpack.c.l.b16 %v242
        %v314 = vunpack.c.h.b16 %v242
        %v315 = vunpack.c.l.b16 %v243
        %v316 = vunpack.c.h.b16 %v243
        %v317 = vunpack.c.l.b16 %v244
        %v318 = vunpack.c.h.b16 %v244
        %v319 = vunpack.c.l.b16 %v245
        %v320 = vunpack.c.h.b16 %v245
        %v321 = vunpack.c.l.b16 %v246
        %v322 = vunpack.c.h.b16 %v246
        %v323 = vunpack.c.l.b16 %v247
        %v324 = vunpack.c.h.b16 %v247
        %v325 = vunpack.c.l.b16 %v248
        %v326 = vunpack.c.h.b16 %v248
        %v327 = vunpack.c.l.b16 %v249
        %v328 = vunpack.c.h.b16 %v249
        %v329 = vunpack.c.l.b16 %v250
        %v330 = vunpack.c.h.b16 %v250
        %v331 = vpack.c.b16 %v301, %v299
        %v332 = vpack.c.b16 %v302, %v300
        %v333 = vpack.c.b16 %v305, %v303
        %v334 = vpack.c.b16 %v306, %v304
        %v335 = vpack.c.b16 %v309, %v307
        %v336 = vpack.c.b16 %v310, %v308
        %v337 = vpack.c.b16 %v313, %v311
        %v338 = vpack.c.b16 %v314, %v312
        %v339 = vpack.c.b16 %v317, %v315
        %v340 = vpack.c.b16 %v318, %v316
        %v341 = vpack.c.b16 %v321, %v319
        %v342 = vpack.c.b16 %v322, %v320
        %v343 = vpack.c.b16 %v325, %v323
        %v344 = vpack.c.b16 %v326, %v324
        %v345 = vpack.c.b16 %v329, %v327
        %v346 = vpack.c.b16 %v330, %v328
        %v395 = vunpack.c.l.b16 %v251
        %v396 = vunpack.c.l.b16 %v252
        %v397 = vunpack.c.l.b16 %v253
        %v398 = vunpack.c.l.b16 %v254
        %v399 = vunpack.c.l.b16 %v255
        %v400 = vunpack.c.l.b16 %v256
        %v401 = vunpack.c.l.b16 %v257
        %v402 = vunpack.c.l.b16 %v258
        %v403 = vunpack.c.l.b16 %v259
        %v404 = vunpack.c.l.b16 %v260
        %v405 = vunpack.c.l.b16 %v261
        %v406 = vunpack.c.l.b16 %v262
        %v407 = vunpack.c.l.b16 %v263
        %v408 = vunpack.c.l.b16 %v264
        %v409 = vunpack.c.l.b16 %v265
        %v410 = vunpack.c.l.b16 %v266
        %v411 = vunpack.c.l.b16 %v267
        %v412 = vunpack.c.l.b16 %v268
        %v413 = vunpack.c.l.b16 %v269
        %v414 = vunpack.c.l.b16 %v270
        %v415 = vunpack.c.l.b16 %v271
        %v416 = vunpack.c.l.b16 %v272
        %v417 = vunpack.c.l.b16 %v273
        %v418 = vunpack.c.l.b16 %v274
        %v419 = vunpack.c.l.b16 %v275
        %v420 = vunpack.c.l.b16 %v276
        %v421 = vunpack.c.l.b16 %v277
        %v422 = vunpack.c.l.b16 %v278
        %v423 = vunpack.c.l.b16 %v279
        %v424 = vunpack.c.l.b16 %v280
        %v425 = vunpack.c.l.b16 %v281
        %v426 = vunpack.c.l.b16 %v282
        %v427 = vpack.c.b16 %v396, %v395
        %v428 = vpack.c.b16 %v398, %v397
        %v429 = vpack.c.b16 %v400, %v399
        %v430 = vpack.c.b16 %v402, %v401
        %v431 = vpack.c.b16 %v404, %v403
        %v432 = vpack.c.b16 %v406, %v405
        %v433 = vpack.c.b16 %v408, %v407
        %v434 = vpack.c.b16 %v410, %v409
        %v435 = vpack.c.b16 %v412, %v411
        %v436 = vpack.c.b16 %v414, %v413
        %v437 = vpack.c.b16 %v416, %v415
        %v438 = vpack.c.b16 %v418, %v417
        %v439 = vpack.c.b16 %v420, %v419
        %v440 = vpack.c.b16 %v422, %v421
        %v441 = vpack.c.b16 %v424, %v423
        %v442 = vpack.c.b16 %v426, %v425
        %459 = vmatprep.subr.bf16.mxu0 0
        %460 = vmatpush1.bf16.msra.mxu0 %v434
        %461 = vmatprep.subr.bf16.mxu0 0
        %462 = vmatpush1.bf16.msra.mxu0 %v433
        %463 = vmatprep.subr.bf16.mxu0 0
        %464 = vmatpush1.bf16.msra.mxu0 %v432
        %465 = vmatprep.subr.bf16.mxu0 0
        %466 = vmatpush1.bf16.msra.mxu0 %v431
        %467 = vmatprep.subr.bf16.mxu0 0
        %468 = vmatpush1.bf16.msra.mxu0 %v430
        %469 = vmatprep.subr.bf16.mxu0 0
        %470 = vmatpush1.bf16.msra.mxu0 %v429
        %471 = vmatprep.subr.bf16.mxu0 0
        %472 = vmatpush1.bf16.msra.mxu0 %v428
        %473 = vmatprep.subr.bf16.mxu0 0
        %474 = vmatpush1.bf16.msra.mxu0 %v427
        %475 = vmatprep.subr.bf16.mxu0 0
        %476 = vmatpush2.bf16.msra.mxu0 %v442
        %477 = vmatprep.subr.bf16.mxu0 0
        %478 = vmatpush2.bf16.msra.mxu0 %v441
        %479 = vmatprep.subr.bf16.mxu0 0
        %480 = vmatpush2.bf16.msra.mxu0 %v440
        %481 = vmatprep.subr.bf16.mxu0 0
        %482 = vmatpush2.bf16.msra.mxu0 %v439
        %483 = vmatprep.subr.bf16.mxu0 0
        %484 = vmatpush2.bf16.msra.mxu0 %v438
        %485 = vmatprep.subr.bf16.mxu0 0
        %486 = vmatpush2.bf16.msra.mxu0 %v437
        %487 = vmatprep.subr.bf16.mxu0 0
        %488 = vmatpush2.bf16.msra.mxu0 %v436
        %489 = vmatprep.subr.bf16.mxu0 0
        %490 = vmatpush2.bf16.msra.mxu0 %v435
        %491 = vmatprep.mubr.bf16.mxu0 %v332
        %492 = vmatmul.mubr.bf16.gmra.mxu0 %v331
        %v493 = vpop.f32.mrf.mxu0
        %v494 = vadd.f32 0.0, %v493
        %v495 = vpop.f32.mrf.mxu0
        %v496 = vpop.f32.mrf.mxu0
        %v497 = vadd.f32 0.0, %v496
        %v498 = vpop.f32.mrf.mxu0
        %499 = vmatprep.mubr.bf16.mxu0 %v334
        %500 = vmatmul.mubr.bf16.gmra.mxu0 %v333
        %v501 = vpop.f32.mrf.mxu0
        %v502 = vadd.f32 0.0, %v501
        %v503 = vpop.f32.mrf.mxu0
        %v504 = vpop.f32.mrf.mxu0
        %v505 = vadd.f32 0.0, %v504
        %v506 = vpop.f32.mrf.mxu0
        %507 = vmatprep.mubr.bf16.mxu0 %v336
        %508 = vmatmul.mubr.bf16.gmra.mxu0 %v335
        %v509 = vpop.f32.mrf.mxu0
        %v510 = vadd.f32 0.0, %v509
        %v511 = vpop.f32.mrf.mxu0
        %v512 = vpop.f32.mrf.mxu0
        %v513 = vadd.f32 0.0, %v512
        %v514 = vpop.f32.mrf.mxu0
        %515 = vmatprep.mubr.bf16.mxu0 %v338
        %516 = vmatmul.mubr.bf16.gmra.mxu0 %v337
        %v517 = vpop.f32.mrf.mxu0
        %v518 = vadd.f32 0.0, %v517
        %v519 = vpop.f32.mrf.mxu0
        %v520 = vpop.f32.mrf.mxu0
        %v521 = vadd.f32 0.0, %v520
        %v522 = vpop.f32.mrf.mxu0
        %523 = vmatprep.mubr.bf16.mxu0 %v340
        %524 = vmatmul.mubr.bf16.gmra.mxu0 %v339
        %v525 = vpop.f32.mrf.mxu0
        %v526 = vadd.f32 0.0, %v525
        %v527 = vpop.f32.mrf.mxu0
        %v528 = vpop.f32.mrf.mxu0
        %v529 = vadd.f32 0.0, %v528
        %v530 = vpop.f32.mrf.mxu0
        %531 = vmatprep.mubr.bf16.mxu0 %v342
        %532 = vmatmul.mubr.bf16.gmra.mxu0 %v341
        %v533 = vpop.f32.mrf.mxu0
        %v534 = vadd.f32 0.0, %v533
        %v535 = vpop.f32.mrf.mxu0
        %v536 = vpop.f32.mrf.mxu0
        %v537 = vadd.f32 0.0, %v536
        %v538 = vpop.f32.mrf.mxu0
        %539 = vmatprep.mubr.bf16.mxu0 %v344
        %540 = vmatmul.mubr.bf16.gmra.mxu0 %v343
        %v541 = vpop.f32.mrf.mxu0
        %v542 = vadd.f32 0.0, %v541
        %v543 = vpop.f32.mrf.mxu0
        %v544 = vpop.f32.mrf.mxu0
        %v545 = vadd.f32 0.0, %v544
        %v546 = vpop.f32.mrf.mxu0
        %547 = vmatprep.mubr.bf16.mxu0 %v346
        %548 = vmatmul.mubr.bf16.gmra.mxu0 %v345
        %v549 = vpop.f32.mrf.mxu0
        %v550 = vadd.f32 0.0, %v549
        %v551 = vpop.f32.mrf.mxu0
        %v552 = vpop.f32.mrf.mxu0
        %v553 = vadd.f32 0.0, %v552
        %v554 = vpop.f32.mrf.mxu0
        %555 = vdwg.mxu0
        %v556 = vadd.f32 %v219, %v494
        %v557 = vadd.f32 %v220, %v497
        %v558 = vadd.f32 %v221, %v502
        %v559 = vadd.f32 %v222, %v505
        %v560 = vadd.f32 %v223, %v510
        %v561 = vadd.f32 %v224, %v513
        %v562 = vadd.f32 %v225, %v518
        %v563 = vadd.f32 %v226, %v521
        %v564 = vadd.f32 %v227, %v526
        %v565 = vadd.f32 %v228, %v529
        %v566 = vadd.f32 %v229, %v534
        %v567 = vadd.f32 %v230, %v537
        %v568 = vadd.f32 %v231, %v542
        %v569 = vadd.f32 %v232, %v545
        %v570 = vadd.f32 %v233, %v550
        %v571 = vadd.f32 %v234, %v553
        %572 = vst [vmem:[%s178] sm:$0xff] %v556
        %573 = vst [vmem:[%s178 + $0x8] sm:$0xff] %v557
        %574 = vst [vmem:[%s178 + $0x10] sm:$0xff] %v558
        %575 = vst [vmem:[%s178 + $0x18] sm:$0xff] %v559
        %576 = vst [vmem:[%s178 + $0x20] sm:$0xff] %v560
        %577 = vst [vmem:[%s178 + $0x28] sm:$0xff] %v561
        %578 = vst [vmem:[%s178 + $0x30] sm:$0xff] %v562
        %579 = vst [vmem:[%s178 + $0x38] sm:$0xff] %v563
        %580 = vst [vmem:[%s178 + $0x40] sm:$0xff] %v564
        %581 = vst [vmem:[%s178 + $0x48] sm:$0xff] %v565
        %582 = vst [vmem:[%s178 + $0x50] sm:$0xff] %v566
        %583 = vst [vmem:[%s178 + $0x58] sm:$0xff] %v567
        %584 = vst [vmem:[%s178 + $0x60] sm:$0xff] %v568
        %585 = vst [vmem:[%s178 + $0x68] sm:$0xff] %v569
        %586 = vst [vmem:[%s178 + $0x70] sm:$0xff] %v570
        %587 = vst [vmem:[%s178 + $0x78] sm:$0xff] %v571
        %s588 = sand.u32 %s90, 1
        %s589 = scalar_lea.sflag [#allocation3], %s588
        %s590 = sand.u32 %s90, 1
        %s591 = smul.addr %s590, 128
        %s592 = scalar_lea.vmem [#allocation2], %s591
        // Predicated region
        $region33: #{graph_forward.1} parent=27 // pred_check
          %p593 = pneg %p100
        $region34: #{graph_forward.1} parent=27 // pred_check_branch
          %595 = sbr.rel (%p593) target = $region36
        $region35: #{graph_forward.1} parent=27 // pred_region
          %s596 = smul.u32 16, %s20
          %s598 = ssub.s32 2048, 2048
          %599 = vsyncadd %s589, %s598
          %s600 = smul.addr %s596, 128
          %s601 = scalar_lea.hbm %s2, %s600
          %s602 = sshll.u32 %s592, 4
          %s603 = int_to_ptr.vmem [resolvable:$true] %s602
          %608 = dma.vmem_to_hbm [thread:$0]  %s603, 2048, %s601, %s589, 128, 128, 8
        $region36: #{graph_forward.1} parent=27 // pred_fallthru
          _
      $region28: #{graph_forward.1} parent=5 // pred_fallthru
        _
      %p609 = scmp.le.s32.totalorder 2, %s11
      // Predicated region
      $region37: #{graph_forward.1} parent=5 // pred_check
        %p610 = pneg %p609
      $region38: #{graph_forward.1} parent=5 // pred_check_branch
        %612 = sbr.rel (%p610) target = $region40
      $region39: #{graph_forward.1} parent=5 // pred_region
        %s613 = ssub.s32 %s11, 2
        // Predicated region
        $region41: #{graph_forward.1} parent=39 // pred_check
          %p614 = pneg %p106
        $region42: #{graph_forward.1} parent=39 // pred_check_branch
          %616 = sbr.rel (%p614) target = $region44
        $region43: #{graph_forward.1} parent=39 // pred_region
          %s617 = sand.u32 %s91, 1
          %s618 = scalar_lea.sflag [#allocation3], %s617
          %s619 = sand.u32 %s91, 1
          %s620 = smul.addr %s619, 128
          %s621 = scalar_lea.vmem [#allocation2], %s620
          %622 = dma.done %s618, 2048
        $region44: #{graph_forward.1} parent=39 // pred_fallthru
          _
      $region40: #{graph_forward.1} parent=5 // pred_fallthru
        _
    $region6: #{graph_forward.1} parent=1 // loop_footer
      %s15 = sadd.s32 1, %s11
    $region7: #{graph_forward.1} parent=1 // loop_footer_branch
      %10 = sbr.rel target = $region3
    $region8: #{graph_forward.1} parent=1 // loop_exit
      _
    %623 = vsyncpa [#allocation3], 1
    %s624 = scalar_lea.sflag [#allocation3], 1
    %625 = vsyncpa %s624, 1

</llo_original>
